<compile_context>
chip_gen: v5e
topology: v5e:2x2
jax: 0.10.0
libtpu: 0.0.40
codegen_flags: <defaults>
</compile_context>

<pallas_src>
import jax
import jax.numpy as jnp
from jax.experimental import pallas as pl
from jax.experimental.pallas import tpu as pltpu

_TILE_B_MAX = 8192   # rows (batch) per grid step; must stay a multiple of 128


def _round_up(n, m):
    return ((n + m - 1) // m) * m


def _mlp_kernel(x_ref,
                w1_ref, b1_ref,
                w2_ref, b2_ref,
                w3_ref, b3_ref,
                w4_ref, b4_ref,
                o_ref):
    # Transposed (features, batch) layout: batch on the lane axis, features on
    # sublanes -> all operands lane-dense. Every matmul accumulates in f32.
    x = x_ref[...]                                            # (25, T) bf16
    h = jnp.dot(w1_ref[...], x, preferred_element_type=jnp.float32)
    h = jnp.maximum(h + b1_ref[...], 0.0)                     # (64, T) f32

    h = jnp.dot(w2_ref[...], h, preferred_element_type=jnp.float32)
    h = jnp.maximum(h + b2_ref[...], 0.0)                     # (32, T) f32

    h = jnp.dot(w3_ref[...], h, preferred_element_type=jnp.float32)
    h = jnp.maximum(h + b3_ref[...], 0.0)                     # (16, T) f32

    out = jnp.dot(w4_ref[...], h, preferred_element_type=jnp.float32)
    o_ref[...] = (out + b4_ref[...]).astype(o_ref.dtype)      # (1, T) lane-dense


def net_forward(x, params, *, tile_b_max=_TILE_B_MAX):
    """x: any shape (B, ...) that flattens to (B, 25). Returns (B, 1) float32."""
    assert tile_b_max > 0 and tile_b_max % 128 == 0, "tile_b_max must be a multiple of 128"
    b = x.shape[0]
    x2d = x.reshape(b, -1).astype(jnp.float32)                # x.view(B, -1)
    assert x2d.shape[1] == 25, f"expected 25 flattened features, got {x2d.shape[1]}"

    (w1, b1), (w2, b2), (w3, b3), (w4, b4) = params           # weights (out, in), biases (out, 1)

    # Tile selection: multiple of 128; at least 2 grid steps when Bp >= 256 so
    # both v7x TensorCores get work; capped at tile_b_max.
    bp0 = _round_up(b, 128)
    target = _round_up(-(-bp0 // 2), 128) if bp0 >= 256 else bp0
    tile_b = min(tile_b_max, target)
    bp = _round_up(b, tile_b)

    # Pad batch to a tile multiple, transpose to (features, batch), stream bf16.
    if bp != b:
        x2d = jnp.pad(x2d, ((0, bp - b), (0, 0)))
    x_t = x2d.T.astype(jnp.bfloat16)                          # (25, Bp) bf16
    w1_bf = w1.astype(jnp.bfloat16)                           # (64, 25) bf16

    grid = (bp // tile_b,)

    def resident(shape):
        # Constant block index -> fetched once, stays VMEM-resident across steps.
        return pl.BlockSpec(shape, lambda i: (0, 0))

    flops = 2 * bp * (25 * 64 + 64 * 32 + 32 * 16 + 16 * 1)
    bytes_accessed = (bp * 25 * 2 + bp * 4                    # streamed x (bf16) + output (f32)
                      + 64 * 25 * 2 + 64 * 4                  # w1 (bf16) + b1
                      + 32 * 64 * 4 + 32 * 4
                      + 16 * 32 * 4 + 16 * 4
                      + 1 * 16 * 4 + 1 * 4)

    out = pl.pallas_call(
        _mlp_kernel,
        out_shape=jax.ShapeDtypeStruct((1, bp), jnp.float32),
        grid=grid,
        in_specs=[
            pl.BlockSpec((25, tile_b), lambda i: (0, i)),     # streamed, lane-dense
            resident((64, 25)), resident((64, 1)),
            resident((32, 64)), resident((32, 1)),
            resident((16, 32)), resident((16, 1)),
            resident((1, 16)), resident((1, 1)),
        ],
        out_specs=pl.BlockSpec((1, tile_b), lambda i: (0, i)),   # lane-dense output
        compiler_params=pltpu.CompilerParams(
            dimension_semantics=("parallel",),                # megacore on v7x
            vmem_limit_bytes=48 * 1024 * 1024,                # < v7x 64 MiB physical
        ),
        cost_estimate=pl.CostEstimate(flops=flops, transcendentals=0,
                                      bytes_accessed=bytes_accessed),
    )(x_t, w1_bf, b1, w2, b2, w3, b3, w4, b4)

    # (1, Bp) lane-dense slab -> (B, 1), dropping padded rows.
    return out[0, :b].reshape(b, 1)


def init_params(key):
    """PyTorch-style init U(-1/sqrt(fan_in), 1/sqrt(fan_in)).
    All weights stored (out, in), biases (out, 1) to match the transposed
    (features, batch) kernel layout."""
    dims = [(25, 64), (64, 32), (32, 16), (16, 1)]
    params = []
    for fan_in, fan_out in dims:
        key, kw, kb = jax.random.split(key, 3)
        bound = fan_in ** -0.5
        w = jax.random.uniform(kw, (fan_out, fan_in), jnp.float32, -bound, bound)
        bias = jax.random.uniform(kb, (fan_out, 1), jnp.float32, -bound, bound)
        params.append((w, bias))
    return params


def _reference(x, params):
    # Mirrors the kernel's math (layer 1 in bf16, f32 accumulation) in plain JAX.
    b = x.shape[0]
    xT = x.reshape(b, -1).astype(jnp.float32).T.astype(jnp.bfloat16)   # (25, B)
    (w1, b1), (w2, b2), (w3, b3), (w4, b4) = params
    h = jnp.maximum(jnp.dot(w1.astype(jnp.bfloat16), xT,
                            preferred_element_type=jnp.float32) + b1, 0.0)
    h = jnp.maximum(jnp.dot(w2, h, preferred_element_type=jnp.float32) + b2, 0.0)
    h = jnp.maximum(jnp.dot(w3, h, preferred_element_type=jnp.float32) + b3, 0.0)
    out = jnp.dot(w4, h, preferred_element_type=jnp.float32) + b4
    return out.T                                                        # (B, 1)


if __name__ == "__main__":
    key = jax.random.PRNGKey(0)
    k_param, k_x = jax.random.split(key)

    params = init_params(k_param)

    # Input: batch=8, flattens to 25 features (a 5x5 patch per sample).
    x = jax.random.normal(k_x, (8, 5, 5), jnp.float32)
    out = jax.block_until_ready(net_forward(x, params))
    ref = _reference(x, params)
    assert out.shape == (8, 1), out.shape
    assert jnp.allclose(out, ref, atol=1e-3, rtol=1e-3), "mismatch vs reference (B=8)"

    # Exercise the multi-step grid + remainder-padding path with a small tile.
    x2 = jax.random.normal(jax.random.PRNGKey(1), (300, 25), jnp.float32)
    out2 = jax.block_until_ready(net_forward(x2, params, tile_b_max=128))
    ref2 = _reference(x2, params)
    assert out2.shape == (300, 1), out2.shape
    assert jnp.allclose(out2, ref2, atol=1e-3, rtol=1e-3), "mismatch vs reference (B=300)"

    print("KERNEL_OK")
</pallas_src>

<mosaic_0001>
module attributes {stable_mosaic.version = 11 : i64} {
  func.func @_mlp_kernel(%arg0: i32, %arg1: memref<25x128xbf16, #tpu.memory_space<vmem>>, %arg2: memref<64x25xbf16, #tpu.memory_space<vmem>>, %arg3: memref<64x1xf32, #tpu.memory_space<vmem>>, %arg4: memref<32x64xf32, #tpu.memory_space<vmem>>, %arg5: memref<32x1xf32, #tpu.memory_space<vmem>>, %arg6: memref<16x32xf32, #tpu.memory_space<vmem>>, %arg7: memref<16x1xf32, #tpu.memory_space<vmem>>, %arg8: memref<1x16xf32, #tpu.memory_space<vmem>>, %arg9: memref<1x1xf32, #tpu.memory_space<vmem>>, %arg10: memref<1x128xf32, #tpu.memory_space<vmem>>) attributes {dimension_semantics = [#tpu.dimension_semantics<parallel>], iteration_bounds = array<i64: 1>, scalar_prefetch = 0 : i64, scratch_operands = 0 : i64, tpu.core_type = #tpu.core_type<tc>, window_params = [{transform_indices = @transform_0, window_bounds = array<i64: 25, 128>}, {pipeline_mode = #tpu.pipeline_mode<synchronous>, transform_indices = @transform_1, window_bounds = array<i64: 64, 25>}, {pipeline_mode = #tpu.pipeline_mode<synchronous>, transform_indices = @transform_2, window_bounds = array<i64: 64, 1>}, {pipeline_mode = #tpu.pipeline_mode<synchronous>, transform_indices = @transform_3, window_bounds = array<i64: 32, 64>}, {pipeline_mode = #tpu.pipeline_mode<synchronous>, transform_indices = @transform_4, window_bounds = array<i64: 32, 1>}, {pipeline_mode = #tpu.pipeline_mode<synchronous>, transform_indices = @transform_5, window_bounds = array<i64: 16, 32>}, {pipeline_mode = #tpu.pipeline_mode<synchronous>, transform_indices = @transform_6, window_bounds = array<i64: 16, 1>}, {pipeline_mode = #tpu.pipeline_mode<synchronous>, transform_indices = @transform_7, window_bounds = array<i64: 1, 16>}, {pipeline_mode = #tpu.pipeline_mode<synchronous>, transform_indices = @transform_8, window_bounds = array<i64: 1, 1>}, {transform_indices = @transform_9, window_bounds = array<i64: 1, 128>}]} {
    %c0 = arith.constant 0 : index
    %c0_0 = arith.constant 0 : index
    %0 = vector.load %arg1[%c0, %c0_0] : memref<25x128xbf16, #tpu.memory_space<vmem>>, vector<25x128xbf16>
    %c0_1 = arith.constant 0 : index
    %c0_2 = arith.constant 0 : index
    %1 = vector.load %arg2[%c0_1, %c0_2] : memref<64x25xbf16, #tpu.memory_space<vmem>>, vector<64x25xbf16>
    %cst = arith.constant dense<0.000000e+00> : vector<64x128xf32>
    %2 = tpu.matmul %1, %0, %cst {dimension_numbers = #tpu.dot_dimension_numbers<[1], [0], [0], [1], [0, 0, 1, 1], [], []>} : vector<64x25xbf16>, vector<25x128xbf16>, vector<64x128xf32> -> vector<64x128xf32>
    %c0_3 = arith.constant 0 : index
    %c0_4 = arith.constant 0 : index
    %3 = vector.load %arg3[%c0_3, %c0_4] : memref<64x1xf32, #tpu.memory_space<vmem>>, vector<64x1xf32>
    %4 = vector.broadcast %3 : vector<64x1xf32> to vector<64x128xf32>
    %5 = arith.addf %2, %4 : vector<64x128xf32>
    %cst_5 = arith.constant 0.000000e+00 : f32
    %6 = vector.broadcast %cst_5 : f32 to vector<64x128xf32>
    %7 = arith.maximumf %5, %6 : vector<64x128xf32>
    %c0_6 = arith.constant 0 : index
    %c0_7 = arith.constant 0 : index
    %8 = vector.load %arg4[%c0_6, %c0_7] : memref<32x64xf32, #tpu.memory_space<vmem>>, vector<32x64xf32>
    %cst_8 = arith.constant dense<0.000000e+00> : vector<32x128xf32>
    %9 = tpu.matmul %8, %7, %cst_8 {dimension_numbers = #tpu.dot_dimension_numbers<[1], [0], [0], [1], [0, 0, 1, 1], [], []>} : vector<32x64xf32>, vector<64x128xf32>, vector<32x128xf32> -> vector<32x128xf32>
    %c0_9 = arith.constant 0 : index
    %c0_10 = arith.constant 0 : index
    %10 = vector.load %arg5[%c0_9, %c0_10] : memref<32x1xf32, #tpu.memory_space<vmem>>, vector<32x1xf32>
    %11 = vector.broadcast %10 : vector<32x1xf32> to vector<32x128xf32>
    %12 = arith.addf %9, %11 : vector<32x128xf32>
    %cst_11 = arith.constant 0.000000e+00 : f32
    %13 = vector.broadcast %cst_11 : f32 to vector<32x128xf32>
    %14 = arith.maximumf %12, %13 : vector<32x128xf32>
    %c0_12 = arith.constant 0 : index
    %c0_13 = arith.constant 0 : index
    %15 = vector.load %arg6[%c0_12, %c0_13] : memref<16x32xf32, #tpu.memory_space<vmem>>, vector<16x32xf32>
    %cst_14 = arith.constant dense<0.000000e+00> : vector<16x128xf32>
    %16 = tpu.matmul %15, %14, %cst_14 {dimension_numbers = #tpu.dot_dimension_numbers<[1], [0], [0], [1], [0, 0, 1, 1], [], []>} : vector<16x32xf32>, vector<32x128xf32>, vector<16x128xf32> -> vector<16x128xf32>
    %c0_15 = arith.constant 0 : index
    %c0_16 = arith.constant 0 : index
    %17 = vector.load %arg7[%c0_15, %c0_16] : memref<16x1xf32, #tpu.memory_space<vmem>>, vector<16x1xf32>
    %18 = vector.broadcast %17 : vector<16x1xf32> to vector<16x128xf32>
    %19 = arith.addf %16, %18 : vector<16x128xf32>
    %cst_17 = arith.constant 0.000000e+00 : f32
    %20 = vector.broadcast %cst_17 : f32 to vector<16x128xf32>
    %21 = arith.maximumf %19, %20 : vector<16x128xf32>
    %c0_18 = arith.constant 0 : index
    %c0_19 = arith.constant 0 : index
    %22 = vector.load %arg8[%c0_18, %c0_19] : memref<1x16xf32, #tpu.memory_space<vmem>>, vector<1x16xf32>
    %cst_20 = arith.constant dense<0.000000e+00> : vector<1x128xf32>
    %23 = tpu.matmul %22, %21, %cst_20 {dimension_numbers = #tpu.dot_dimension_numbers<[1], [0], [0], [1], [0, 0, 1, 1], [], []>} : vector<1x16xf32>, vector<16x128xf32>, vector<1x128xf32> -> vector<1x128xf32>
    %c0_21 = arith.constant 0 : index
    %c0_22 = arith.constant 0 : index
    %24 = vector.load %arg9[%c0_21, %c0_22] : memref<1x1xf32, #tpu.memory_space<vmem>>, vector<1x1xf32>
    %25 = vector.broadcast %24 : vector<1x1xf32> to vector<1x128xf32>
    %26 = arith.addf %23, %25 : vector<1x128xf32>
    %c0_23 = arith.constant 0 : index
    %c0_24 = arith.constant 0 : index
    %27 = vector.load %arg10[%c0_23, %c0_24] : memref<1x128xf32, #tpu.memory_space<vmem>>, vector<1x128xf32>
    tpu.vector_store %arg10[%c0_23, %c0_24], %26 {strides = array<i32>} : memref<1x128xf32, #tpu.memory_space<vmem>>, vector<1x128xf32>,
    return
  }
  func.func @transform_0(%arg0: i32) -> (i32, i32) {
    %c0_i32 = arith.constant 0 : i32
    %c0_i32_0 = arith.constant 0 : i32
    return %c0_i32, %arg0 : i32, i32
  }
  func.func @transform_1(%arg0: i32) -> (i32, i32) {
    %c0_i32 = arith.constant 0 : i32
    %c0_i32_0 = arith.constant 0 : i32
    %c0_i32_1 = arith.constant 0 : i32
    return %c0_i32, %c0_i32_0 : i32, i32
  }
  func.func @transform_2(%arg0: i32) -> (i32, i32) {
    %c0_i32 = arith.constant 0 : i32
    %c0_i32_0 = arith.constant 0 : i32
    %c0_i32_1 = arith.constant 0 : i32
    return %c0_i32, %c0_i32_0 : i32, i32
  }
  func.func @transform_3(%arg0: i32) -> (i32, i32) {
    %c0_i32 = arith.constant 0 : i32
    %c0_i32_0 = arith.constant 0 : i32
    %c0_i32_1 = arith.constant 0 : i32
    return %c0_i32, %c0_i32_0 : i32, i32
  }
  func.func @transform_4(%arg0: i32) -> (i32, i32) {
    %c0_i32 = arith.constant 0 : i32
    %c0_i32_0 = arith.constant 0 : i32
    %c0_i32_1 = arith.constant 0 : i32
    return %c0_i32, %c0_i32_0 : i32, i32
  }
  func.func @transform_5(%arg0: i32) -> (i32, i32) {
    %c0_i32 = arith.constant 0 : i32
    %c0_i32_0 = arith.constant 0 : i32
    %c0_i32_1 = arith.constant 0 : i32
    return %c0_i32, %c0_i32_0 : i32, i32
  }
  func.func @transform_6(%arg0: i32) -> (i32, i32) {
    %c0_i32 = arith.constant 0 : i32
    %c0_i32_0 = arith.constant 0 : i32
    %c0_i32_1 = arith.constant 0 : i32
    return %c0_i32, %c0_i32_0 : i32, i32
  }
  func.func @transform_7(%arg0: i32) -> (i32, i32) {
    %c0_i32 = arith.constant 0 : i32
    %c0_i32_0 = arith.constant 0 : i32
    %c0_i32_1 = arith.constant 0 : i32
    return %c0_i32, %c0_i32_0 : i32, i32
  }
  func.func @transform_8(%arg0: i32) -> (i32, i32) {
    %c0_i32 = arith.constant 0 : i32
    %c0_i32_0 = arith.constant 0 : i32
    %c0_i32_1 = arith.constant 0 : i32
    return %c0_i32, %c0_i32_0 : i32, i32
  }
  func.func @transform_9(%arg0: i32) -> (i32, i32) {
    %c0_i32 = arith.constant 0 : i32
    %c0_i32_0 = arith.constant 0 : i32
    return %c0_i32, %arg0 : i32, i32
  }
}

</mosaic_0001>

<llo_original>
// kernel: tpu_custom_call.1
$region0: #{tpu_custom_call.1}
  #allocation0 [shape = 'u32[]', space=smem, size = 0x4, offset = 0x4, fixed_abs, tag = 'smem constant byte address 0x4 - core index']
  #allocation1 [shape = 'u32[72,128]{1,0:T(1,128)}', space=vmem, size = 0x9000, scoped, tag = 'internal scratch']
  #allocation2 [shape = 'f32[1,1]{1,0:T(1,128)S(1)}', space=vmem, size = 0x200, scoped, tag = 'scoped memory for tpu_custom_call.1']
  %s0 = inlined_call_operand.vmem [shape: bf16[25,128], index: 0, kind: input, shape index: {}]
  %s1 = inlined_call_operand.vmem [shape: bf16[64,25], index: 1, kind: input, shape index: {}]
  %s2 = inlined_call_operand.vmem [shape: f32[64,1], index: 2, kind: input, shape index: {}]
  %s3 = inlined_call_operand.vmem [shape: f32[32,64], index: 3, kind: input, shape index: {}]
  %s4 = inlined_call_operand.vmem [shape: f32[32,1], index: 4, kind: input, shape index: {}]
  %s5 = inlined_call_operand.vmem [shape: f32[16,32], index: 5, kind: input, shape index: {}]
  %s6 = inlined_call_operand.vmem [shape: f32[16,1], index: 6, kind: input, shape index: {}]
  %s7 = inlined_call_operand.vmem [shape: f32[1,16], index: 7, kind: input, shape index: {}]
  %s8 = inlined_call_operand.<no memory space> [shape: f32[1,1], index: 8, kind: input, shape index: {}]
  %s9 = inlined_call_operand.hbm [shape: f32[1,128], index: 9, kind: output, shape index: {}]
  %s10 = sld [smem:[#allocation0]]
  $region46: #{tpu_custom_call.1} parent=0
    _
  %s12 = ssub.s32 1, %s10
  %s13 = scalar_select 0, %s12, %s10
  %v14 = vstv %s8
  %15 = vst [vmem:[#allocation2] sm:$0x1] %v14
  $region1: #{tpu_custom_call.1} parent=0
    #allocation3 [shape = 'u8[512]{0}', space=vmem, size = 0x400, scoped, tag = 'output window, operand 0, single buffered']
    #allocation4 [shape = 's32[1]{0}', space=sflag, size = 0x4, scoped, tag = 'scoped memory for tpu_custom_call.1']
    %16 = vsyncpa [#allocation4], 0
    // Predicated region
    $region2: #{tpu_custom_call.1} parent=1 // pred_check
      _
    $region3: #{tpu_custom_call.1} parent=1 // pred_check_branch
      %18 = sbr.rel (0) target = $region5
    $region4: #{tpu_custom_call.1} parent=1 // pred_region
      _
    $region5: #{tpu_custom_call.1} parent=1 // pred_fallthru
      _
    // Predicated region
    $region6: #{tpu_custom_call.1} parent=1 // pred_check
      _
    $region7: #{tpu_custom_call.1} parent=1 // pred_check_branch
      %20 = sbr.rel (0) target = $region9
    $region8: #{tpu_custom_call.1} parent=1 // pred_region
      _
    $region9: #{tpu_custom_call.1} parent=1 // pred_fallthru
      _
    // Predicated region
    $region10: #{tpu_custom_call.1} parent=1 // pred_check
      _
    $region11: #{tpu_custom_call.1} parent=1 // pred_check_branch
      %22 = sbr.rel (0) target = $region13
    $region12: #{tpu_custom_call.1} parent=1 // pred_region
      _
    $region13: #{tpu_custom_call.1} parent=1 // pred_fallthru
      _
    // Predicated region
    $region14: #{tpu_custom_call.1} parent=1 // pred_check
      _
    $region15: #{tpu_custom_call.1} parent=1 // pred_check_branch
      %24 = sbr.rel (0) target = $region17
    $region16: #{tpu_custom_call.1} parent=1 // pred_region
      _
    $region17: #{tpu_custom_call.1} parent=1 // pred_fallthru
      _
    // Predicated region
    $region18: #{tpu_custom_call.1} parent=1 // pred_check
      _
    $region19: #{tpu_custom_call.1} parent=1 // pred_check_branch
      %26 = sbr.rel (0) target = $region21
    $region20: #{tpu_custom_call.1} parent=1 // pred_region
      _
    $region21: #{tpu_custom_call.1} parent=1 // pred_fallthru
      _
    // Predicated region
    $region22: #{tpu_custom_call.1} parent=1 // pred_check
      _
    $region23: #{tpu_custom_call.1} parent=1 // pred_check_branch
      %28 = sbr.rel (0) target = $region25
    $region24: #{tpu_custom_call.1} parent=1 // pred_region
      _
    $region25: #{tpu_custom_call.1} parent=1 // pred_fallthru
      _
    // Predicated region
    $region26: #{tpu_custom_call.1} parent=1 // pred_check
      _
    $region27: #{tpu_custom_call.1} parent=1 // pred_check_branch
      %30 = sbr.rel (0) target = $region29
    $region28: #{tpu_custom_call.1} parent=1 // pred_region
      _
    $region29: #{tpu_custom_call.1} parent=1 // pred_fallthru
      _
    // Predicated region
    $region30: #{tpu_custom_call.1} parent=1 // pred_check
      _
    $region31: #{tpu_custom_call.1} parent=1 // pred_check_branch
      %32 = sbr.rel (0) target = $region33
    $region32: #{tpu_custom_call.1} parent=1 // pred_region
      _
    $region33: #{tpu_custom_call.1} parent=1 // pred_fallthru
      _
    // Predicated region
    $region34: #{tpu_custom_call.1} parent=1 // pred_check
      _
    $region35: #{tpu_custom_call.1} parent=1 // pred_check_branch
      %34 = sbr.rel (0) target = $region37
    $region36: #{tpu_custom_call.1} parent=1 // pred_region
      _
    $region37: #{tpu_custom_call.1} parent=1 // pred_fallthru
      _
    %v36 = vld [vmem:[%s0] sm:$0xf]
    %v37 = vld [vmem:[%s0 + $0x4] sm:$0xf]
    %v38 = vld [vmem:[%s0 + $0x8] sm:$0xf]
    %v39 = vld [vmem:[%s0 + $0xc] sm:$0x1]
    %v40 = vld [vmem:[%s1] sm:$0xf]
    %v41 = vld [vmem:[%s1 + $0x4] sm:$0xf]
    %v42 = vld [vmem:[%s1 + $0x8] sm:$0xf]
    %v43 = vld [vmem:[%s1 + $0xc] sm:$0xf]
    %v44 = vld [vmem:[%s1 + $0x10] sm:$0xf]
    %v45 = vld [vmem:[%s1 + $0x14] sm:$0xf]
    %v46 = vld [vmem:[%s1 + $0x18] sm:$0xf]
    %v47 = vld [vmem:[%s1 + $0x1c] sm:$0xf]
    %v48 = vld [vmem:[%s2] sm:$0xff]
    %v49 = vld [vmem:[%s2 + $0x8] sm:$0xff]
    %v50 = vld [vmem:[%s2 + $0x10] sm:$0xff]
    %v51 = vld [vmem:[%s2 + $0x18] sm:$0xff]
    %v52 = vld [vmem:[%s2 + $0x20] sm:$0xff]
    %v53 = vld [vmem:[%s2 + $0x28] sm:$0xff]
    %v54 = vld [vmem:[%s2 + $0x30] sm:$0xff]
    %v55 = vld [vmem:[%s2 + $0x38] sm:$0xff]
    %57 = vset.pattern.permute.xlu0 0
    %58 = vperm.xlu0 %57, %v48
    %v59 = vpop.permute.xlu0 %58
    %62 = vset.pattern.permute.xlu0 0
    %63 = vperm.xlu0 %62, %v49
    %v64 = vpop.permute.xlu0 %63
    %67 = vset.pattern.permute.xlu0 0
    %68 = vperm.xlu0 %67, %v50
    %v69 = vpop.permute.xlu0 %68
    %72 = vset.pattern.permute.xlu0 0
    %73 = vperm.xlu0 %72, %v51
    %v74 = vpop.permute.xlu0 %73
    %77 = vset.pattern.permute.xlu0 0
    %78 = vperm.xlu0 %77, %v52
    %v79 = vpop.permute.xlu0 %78
    %82 = vset.pattern.permute.xlu0 0
    %83 = vperm.xlu0 %82, %v53
    %v84 = vpop.permute.xlu0 %83
    %87 = vset.pattern.permute.xlu0 0
    %88 = vperm.xlu0 %87, %v54
    %v89 = vpop.permute.xlu0 %88
    %92 = vset.pattern.permute.xlu0 0
    %93 = vperm.xlu0 %92, %v55
    %v94 = vpop.permute.xlu0 %93
    %v104 = vunpack.c.l.b16 %v40
    %v105 = vunpack.c.l.b16 %v41
    %v106 = vunpack.c.l.b16 %v42
    %v107 = vunpack.c.l.b16 %v43
    %v108 = vunpack.c.l.b16 %v44
    %v109 = vunpack.c.l.b16 %v45
    %v110 = vunpack.c.l.b16 %v46
    %v111 = vunpack.c.l.b16 %v47
    %v112 = vpack.c.b16 %v105, %v104
    %v113 = vpack.c.b16 %v107, %v106
    %v114 = vpack.c.b16 %v109, %v108
    %v115 = vpack.c.b16 %v111, %v110
    %v120 = vunpack.c.l.b16 %v36
    %v121 = vunpack.c.l.b16 %v37
    %v122 = vunpack.c.l.b16 %v38
    %v123 = vunpack.c.l.b16 %v39
    %v124 = vpack.c.b16 %v121, %v120
    %v125 = vpack.c.b16 %v123, %v122
    %vm127 = vcmask 203776
    %v129 = vsel %vm127, %v112, 0
    %v132 = vsel %vm127, %v113, 0
    %v135 = vsel %vm127, %v114, 0
    %v138 = vsel %vm127, %v115, 0
    %vm140 = vcmask 1043456
    %vm141 = vcmask 1044480
    %v142 = vsel %vm140, 4294967295, 65535
    %v143 = vsel %vm141, %v142, 0
    %v145 = vand.u32 %v125, %v143
    %147 = vmatpush.bf16.msra.mxu0 0
    %148 = vmatpush.bf16.msra.mxu0 0
    %149 = vmatpush.bf16.msra.mxu0 0
    %150 = vmatpush.bf16.msra.mxu0 0
    %151 = vmatpush.bf16.msra.mxu0 0
    %152 = vmatpush.bf16.msra.mxu0 0
    %153 = vmatpush.bf16.msra.mxu0 %v145
    %154 = vmatpush.bf16.msra.mxu0 %v124
    %155 = vmatmul.bf16.gmra.mxu0 %v129
    %v156 = vpop.f32.mrf.mxu0
    %v157 = vadd.f32 %v59, %v156
    %v158 = vpop.f32.mrf.mxu0
    %v159 = vadd.f32 %v64, %v158
    %160 = vmatmul.bf16.gmra.mxu0 %v132
    %v161 = vpop.f32.mrf.mxu0
    %v162 = vadd.f32 %v69, %v161
    %v163 = vpop.f32.mrf.mxu0
    %v164 = vadd.f32 %v74, %v163
    %165 = vmatmul.bf16.gmra.mxu0 %v135
    %v166 = vpop.f32.mrf.mxu0
    %v167 = vadd.f32 %v79, %v166
    %v168 = vpop.f32.mrf.mxu0
    %v169 = vadd.f32 %v84, %v168
    %170 = vmatmul.bf16.gmra.mxu0 %v138
    %v171 = vpop.f32.mrf.mxu0
    %v172 = vadd.f32 %v89, %v171
    %v173 = vpop.f32.mrf.mxu0
    %v174 = vadd.f32 %v94, %v173
    %175 = vdwg.mxu0
    %v176 = vmax.f32 %v157, 0.0
    %v177 = vmax.f32 %v159, 0.0
    %v178 = vmax.f32 %v162, 0.0
    %v179 = vmax.f32 %v164, 0.0
    %v180 = vmax.f32 %v167, 0.0
    %v181 = vmax.f32 %v169, 0.0
    %v182 = vmax.f32 %v172, 0.0
    %v183 = vmax.f32 %v174, 0.0
    %v184 = vld [vmem:[%s3] sm:$0xff]
    %v185 = vld [vmem:[%s3 + $0x8] sm:$0xff]
    %v186 = vld [vmem:[%s3 + $0x10] sm:$0xff]
    %v187 = vld [vmem:[%s3 + $0x18] sm:$0xff]
    %v188 = vld [vmem:[%s4] sm:$0xff]
    %v189 = vld [vmem:[%s4 + $0x8] sm:$0xff]
    %v190 = vld [vmem:[%s4 + $0x10] sm:$0xff]
    %v191 = vld [vmem:[%s4 + $0x18] sm:$0xff]
    %193 = vset.pattern.permute.xlu0 0
    %194 = vperm.xlu0 %193, %v188
    %v195 = vpop.permute.xlu0 %194
    %198 = vset.pattern.permute.xlu0 0
    %199 = vperm.xlu0 %198, %v189
    %v200 = vpop.permute.xlu0 %199
    %203 = vset.pattern.permute.xlu0 0
    %204 = vperm.xlu0 %203, %v190
    %v205 = vpop.permute.xlu0 %204
    %208 = vset.pattern.permute.xlu0 0
    %209 = vperm.xlu0 %208, %v191
    %v210 = vpop.permute.xlu0 %209
    %vm212 = vcmask 523264
    %v214 = vsel %vm212, %v184, 0
    %v217 = vsel %vm212, %v185, 0
    %v220 = vsel %vm212, %v186, 0
    %v223 = vsel %vm212, %v187, 0
    %225 = vmatpush.msra.mxu0 0.0
    %226 = vmatpush.msra.mxu0 0.0
    %227 = vmatpush.msra.mxu0 0.0
    %228 = vmatpush.msra.mxu0 0.0
    %229 = vmatpush.msra.mxu0 0.0
    %230 = vmatpush.msra.mxu0 0.0
    %231 = vmatpush.msra.mxu0 0.0
    %232 = vmatpush.msra.mxu0 0.0
    %233 = vmatpush.msra.mxu0 %v183
    %234 = vmatpush.msra.mxu0 %v182
    %235 = vmatpush.msra.mxu0 %v181
    %236 = vmatpush.msra.mxu0 %v180
    %237 = vmatpush.msra.mxu0 %v179
    %238 = vmatpush.msra.mxu0 %v178
    %239 = vmatpush.msra.mxu0 %v177
    %240 = vmatpush.msra.mxu0 %v176
    %241 = vmatmul.f32.gmra.mxu0 %v214
    %v242 = vpop.f32.mrf.mxu0
    %v243 = vadd.f32 %v195, %v242
    %244 = vmatmul.f32.gmra.mxu0 %v217
    %v245 = vpop.f32.mrf.mxu0
    %v246 = vadd.f32 %v200, %v245
    %247 = vmatmul.f32.gmra.mxu0 %v220
    %v248 = vpop.f32.mrf.mxu0
    %v249 = vadd.f32 %v205, %v248
    %250 = vmatmul.f32.gmra.mxu0 %v223
    %v251 = vpop.f32.mrf.mxu0
    %v252 = vadd.f32 %v210, %v251
    %253 = vdwg.mxu0
    %v254 = vmax.f32 %v243, 0.0
    %v255 = vmax.f32 %v246, 0.0
    %v256 = vmax.f32 %v249, 0.0
    %v257 = vmax.f32 %v252, 0.0
    %v258 = vld [vmem:[%s5] sm:$0xff]
    %v259 = vld [vmem:[%s5 + $0x8] sm:$0xff]
    %v260 = vld [vmem:[%s6] sm:$0xff]
    %v261 = vld [vmem:[%s6 + $0x8] sm:$0xff]
    %263 = vset.pattern.permute.xlu0 0
    %264 = vperm.xlu0 %263, %v260
    %v265 = vpop.permute.xlu0 %264
    %268 = vset.pattern.permute.xlu0 0
    %269 = vperm.xlu0 %268, %v261
    %v270 = vpop.permute.xlu0 %269
    %vm272 = vcmask 261120
    %v274 = vsel %vm272, %v258, 0
    %v277 = vsel %vm272, %v259, 0
    %279 = vmatpush.msra.mxu0 0.0
    %280 = vmatpush.msra.mxu0 0.0
    %281 = vmatpush.msra.mxu0 0.0
    %282 = vmatpush.msra.mxu0 0.0
    %283 = vmatpush.msra.mxu0 0.0
    %284 = vmatpush.msra.mxu0 0.0
    %285 = vmatpush.msra.mxu0 0.0
    %286 = vmatpush.msra.mxu0 0.0
    %287 = vmatpush.msra.mxu0 0.0
    %288 = vmatpush.msra.mxu0 0.0
    %289 = vmatpush.msra.mxu0 0.0
    %290 = vmatpush.msra.mxu0 0.0
    %291 = vmatpush.msra.mxu0 %v257
    %292 = vmatpush.msra.mxu0 %v256
    %293 = vmatpush.msra.mxu0 %v255
    %294 = vmatpush.msra.mxu0 %v254
    %295 = vmatmul.f32.gmra.mxu0 %v274
    %v296 = vpop.f32.mrf.mxu0
    %v297 = vadd.f32 %v265, %v296
    %298 = vmatmul.f32.gmra.mxu0 %v277
    %v299 = vpop.f32.mrf.mxu0
    %v300 = vadd.f32 %v270, %v299
    %301 = vdwg.mxu0
    %v302 = vmax.f32 %v297, 0.0
    %v303 = vmax.f32 %v300, 0.0
    %v304 = vld [vmem:[%s7] sm:$0x1]
    %v305 = vld [vmem:[#allocation2] sm:$0x1]
    %307 = vset.pattern.permute.xlu0 0
    %308 = vperm.xlu0 %307, %v305
    %v309 = vpop.permute.xlu0 %308
    %v311 = vperm.slane %v309, 0
    %vm312 = vcmask 130048
    %v314 = vsel %vm312, %v304, 0
    %316 = vmatpush.msra.mxu0 0.0
    %317 = vmatpush.msra.mxu0 0.0
    %318 = vmatpush.msra.mxu0 0.0
    %319 = vmatpush.msra.mxu0 0.0
    %320 = vmatpush.msra.mxu0 0.0
    %321 = vmatpush.msra.mxu0 0.0
    %322 = vmatpush.msra.mxu0 0.0
    %323 = vmatpush.msra.mxu0 0.0
    %324 = vmatpush.msra.mxu0 0.0
    %325 = vmatpush.msra.mxu0 0.0
    %326 = vmatpush.msra.mxu0 0.0
    %327 = vmatpush.msra.mxu0 0.0
    %328 = vmatpush.msra.mxu0 0.0
    %329 = vmatpush.msra.mxu0 0.0
    %330 = vmatpush.msra.mxu0 %v303
    %331 = vmatpush.msra.mxu0 %v302
    %332 = vmatmul.f32.gmra.mxu0 %v314
    %v333 = vpop.f32.mrf.mxu0
    %v334 = vadd.f32 %v311, %v333
    %335 = vdwg.mxu0
    %336 = vst [vmem:[#allocation3] sm:$0x1] %v334
    // Predicated region
    $region38: #{tpu_custom_call.1} parent=1 // pred_check
      _
    $region39: #{tpu_custom_call.1} parent=1 // pred_check_branch
      %338 = sbr.rel (0) target = $region41
    $region40: #{tpu_custom_call.1} parent=1 // pred_region
      %340 = vsyncadd [#allocation4], 0
      %s342 = sshll.u32 [#allocation3], 4
      %s343 = int_to_ptr.vmem [resolvable:$true] %s342
      %s344 = sshll.u32 %s9, 4
      %s345 = int_to_ptr.hbm [resolvable:$true] %s344
      %347 = dma.vmem_to_hbm [thread:$0]  %s343, 16, %s345, [#allocation4]
    $region41: #{tpu_custom_call.1} parent=1 // pred_fallthru
      _
    // Predicated region
    $region42: #{tpu_custom_call.1} parent=1 // pred_check
      _
    $region43: #{tpu_custom_call.1} parent=1 // pred_check_branch
      %349 = sbr.rel (0) target = $region45
    $region44: #{tpu_custom_call.1} parent=1 // pred_region
      %351 = dma.done [#allocation4], 16
    $region45: #{tpu_custom_call.1} parent=1 // pred_fallthru
      _
    %352 = vsyncpa [#allocation4], 1

</llo_original>
